<compile_context>
chip_gen: v5e
topology: v5e:2x2
jax: 0.10.0
libtpu: 0.0.40
codegen_flags: <defaults>
</compile_context>

<pallas_src>
import functools

import jax
import jax.numpy as jnp
from jax.experimental import pallas as pl
from jax.experimental.pallas import tpu as pltpu


def _self_attn_fc_kernel(x_ref, wc_ref, bc_ref, w1t_ref, b1_ref, w2t_ref, b2_ref,
                         o_ref, s_ref):
    # x_ref:  (TB, C, L)      input block (full C, L extents; tiled over batch)
    # wc_ref: (C, 1)          conv1d(1x1) weight, channels on sublanes
    # bc_ref: (1, 1)          conv1d bias
    # w1t_ref:(L, H)          Linear1 weight, pre-transposed (PyTorch (H, L))
    # b1_ref: (1, H)
    # w2t_ref:(H, L)          Linear2 weight, pre-transposed (PyTorch (L, H))
    # b2_ref: (1, L)
    # o_ref:  (TB, C, L)      x * scale
    # s_ref:  (TB, 1, L)      scale (attention map)
    x = x_ref[...].astype(jnp.float32)                       # (TB, C, L)

    # 1x1 Conv1d with out_channels=1: weighted sum over channels + bias.
    wc = wc_ref[...].astype(jnp.float32)                     # (C, 1)
    y = jnp.sum(x * wc[None, :, :], axis=1)                  # (TB, L)
    y = y + bc_ref[...].astype(jnp.float32)                  # broadcast (1,1)

    # FC bottleneck over the spatial (L) axis: Linear -> ReLU -> Linear.
    h = jnp.dot(y, w1t_ref[...].astype(jnp.float32),
                preferred_element_type=jnp.float32)          # (TB, H)
    h = jnp.maximum(h + b1_ref[...].astype(jnp.float32), 0.0)
    z = jnp.dot(h, w2t_ref[...].astype(jnp.float32),
                preferred_element_type=jnp.float32)          # (TB, L)
    z = z + b2_ref[...].astype(jnp.float32)

    # Sigmoid gate (EUP exp).
    scale = 1.0 / (1.0 + jnp.exp(-z))                        # (TB, L)

    o_ref[...] = (x * scale[:, None, :]).astype(o_ref.dtype)
    s_ref[...] = scale[:, None, :].astype(s_ref.dtype)


def _pick_batch_tile(B, C, L, itemsize, budget_bytes):
    # Bytes resident per batch element: x block in + out + scale, double-buffered.
    per_batch = (C * L + C * L + L) * itemsize * 2
    tb = max(1, min(B, budget_bytes // max(per_batch, 1)))
    # Shrink to a divisor of B so every block is full (no partial-edge blocks).
    while B % tb:
        tb -= 1
    return tb


def self_attention_module_fc(x, conv_w, conv_b, w1, b1, w2, b2, *,
                             return_map=False, batch_tile=None,
                             vmem_block_budget_bytes=16 * 1024 * 1024):
    """Forward of SelfAttentionModuleFC.

    x:      (B, C, L)        with L == d_lin
    conv_w: (C,)             Conv1d(C, 1, 1) weight (squeezed)
    conv_b: scalar           Conv1d bias
    w1:     (H, L), b1: (H,) Linear(d_lin, d_lin//4)
    w2:     (L, H), b2: (L,) Linear(d_lin//4, d_lin)
    """
    B, C, L = x.shape
    H = w1.shape[0]
    assert w1.shape == (H, L) and w2.shape == (L, H)
    assert b1.shape == (H,) and b2.shape == (L,) and conv_w.shape == (C,)

    if batch_tile is None:
        tb = _pick_batch_tile(B, C, L, x.dtype.itemsize, vmem_block_budget_bytes)
    else:
        tb = min(int(batch_tile), B)
        while B % tb:
            tb -= 1
    # TODO(synk): if a single (1, C, L) batch slab ever exceeds VMEM, split into
    # a two-pass (channel-reduce then scale) pipeline over C/L tiles.

    # Small parameter reshapes (negligible vs. x traffic); weights pre-transposed
    # so the kernel does plain row-major matmuls.
    wc2 = conv_w.reshape(C, 1).astype(x.dtype)
    bc2 = jnp.asarray(conv_b, dtype=x.dtype).reshape(1, 1)
    w1t = jnp.transpose(w1).astype(x.dtype)          # (L, H)
    b1r = b1.reshape(1, H).astype(x.dtype)
    w2t = jnp.transpose(w2).astype(x.dtype)          # (H, L)
    b2r = b2.reshape(1, L).astype(x.dtype)

    grid = (B // tb,)

    out, smap = pl.pallas_call(
        _self_attn_fc_kernel,
        out_shape=(jax.ShapeDtypeStruct((B, C, L), x.dtype),
                   jax.ShapeDtypeStruct((B, 1, L), x.dtype)),
        grid_spec=pltpu.PrefetchScalarGridSpec(
            num_scalar_prefetch=0,
            grid=grid,
            in_specs=[
                pl.BlockSpec((tb, C, L), lambda i: (i, 0, 0)),   # x
                pl.BlockSpec((C, 1), lambda i: (0, 0)),          # conv weight
                pl.BlockSpec((1, 1), lambda i: (0, 0)),          # conv bias
                pl.BlockSpec((L, H), lambda i: (0, 0)),          # W1^T
                pl.BlockSpec((1, H), lambda i: (0, 0)),          # b1
                pl.BlockSpec((H, L), lambda i: (0, 0)),          # W2^T
                pl.BlockSpec((1, L), lambda i: (0, 0)),          # b2
            ],
            out_specs=(
                pl.BlockSpec((tb, C, L), lambda i: (i, 0, 0)),   # x * scale
                pl.BlockSpec((tb, 1, L), lambda i: (i, 0, 0)),   # scale map
            ),
        ),
        compiler_params=pltpu.CompilerParams(
            dimension_semantics=("parallel",),
            vmem_limit_bytes=48 * 1024 * 1024,
        ),
    )(x, wc2, bc2, w1t, b1r, w2t, b2r)

    if return_map:
        return out, smap
    return out


def self_attention_module_fc_ref(x, conv_w, conv_b, w1, b1, w2, b2):
    """Plain-JAX reference (f32)."""
    xf = x.astype(jnp.float32)
    y = jnp.einsum('bcl,c->bl', xf, conv_w.astype(jnp.float32)) + conv_b   # (B, L)
    h = jax.nn.relu(y @ w1.astype(jnp.float32).T + b1.astype(jnp.float32)) # (B, H)
    z = h @ w2.astype(jnp.float32).T + b2.astype(jnp.float32)              # (B, L)
    scale = jax.nn.sigmoid(z)[:, None, :]                                  # (B, 1, L)
    return (xf * scale).astype(x.dtype), scale.astype(x.dtype)


if __name__ == "__main__":
    # Small shapes consistent with the module: x is (batch, c_in, d_lin).
    B, C, L = 4, 8, 32          # batch=4, channels=8, spatial (d_lin)=32
    H = L // 4                  # hidden = 8

    key = jax.random.PRNGKey(0)
    ks = jax.random.split(key, 7)
    x = jax.random.normal(ks[0], (B, C, L), dtype=jnp.float32)
    conv_w = 0.3 * jax.random.normal(ks[1], (C,), dtype=jnp.float32)
    conv_b = 0.1 * jax.random.normal(ks[2], (), dtype=jnp.float32)
    w1 = 0.3 * jax.random.normal(ks[3], (H, L), dtype=jnp.float32)
    b1 = 0.1 * jax.random.normal(ks[4], (H,), dtype=jnp.float32)
    w2 = 0.3 * jax.random.normal(ks[5], (L, H), dtype=jnp.float32)
    b2 = 0.1 * jax.random.normal(ks[6], (L,), dtype=jnp.float32)

    out, smap = self_attention_module_fc(
        x, conv_w, conv_b, w1, b1, w2, b2,
        return_map=True, batch_tile=2)      # batch_tile=2 -> 2 grid steps (exercise pipeline)
    out = jax.block_until_ready(out)
    smap = jax.block_until_ready(smap)

    ref_out, ref_scale = self_attention_module_fc_ref(x, conv_w, conv_b, w1, b1, w2, b2)

    assert out.shape == (B, C, L)
    assert smap.shape == (B, 1, L)
    # Loose-ish tolerance to cover possible MXU f32->bf16-pass rounding of the
    # tiny in-kernel matmuls vs. the XLA reference path.
    assert jnp.allclose(out, ref_out, atol=2e-2, rtol=2e-2)
    assert jnp.allclose(smap, ref_scale, atol=2e-2, rtol=2e-2)

    print("KERNEL_OK")
</pallas_src>

<mosaic_0001>
module attributes {stable_mosaic.version = 11 : i64} {
  func.func @_self_attn_fc_kernel(%arg0: i32, %arg1: memref<2x8x32xf32, #tpu.memory_space<vmem>>, %arg2: memref<8x1xf32, #tpu.memory_space<vmem>>, %arg3: memref<1x1xf32, #tpu.memory_space<vmem>>, %arg4: memref<32x8xf32, #tpu.memory_space<vmem>>, %arg5: memref<1x8xf32, #tpu.memory_space<vmem>>, %arg6: memref<8x32xf32, #tpu.memory_space<vmem>>, %arg7: memref<1x32xf32, #tpu.memory_space<vmem>>, %arg8: memref<2x8x32xf32, #tpu.memory_space<vmem>>, %arg9: memref<2x1x32xf32, #tpu.memory_space<vmem>>) attributes {dimension_semantics = [#tpu.dimension_semantics<parallel>], iteration_bounds = array<i64: 2>, scalar_prefetch = 0 : i64, scratch_operands = 0 : i64, tpu.core_type = #tpu.core_type<tc>, window_params = [{transform_indices = @transform_0, window_bounds = array<i64: 2, 8, 32>}, {pipeline_mode = #tpu.pipeline_mode<synchronous>, transform_indices = @transform_1, window_bounds = array<i64: 8, 1>}, {pipeline_mode = #tpu.pipeline_mode<synchronous>, transform_indices = @transform_2, window_bounds = array<i64: 1, 1>}, {pipeline_mode = #tpu.pipeline_mode<synchronous>, transform_indices = @transform_3, window_bounds = array<i64: 32, 8>}, {pipeline_mode = #tpu.pipeline_mode<synchronous>, transform_indices = @transform_4, window_bounds = array<i64: 1, 8>}, {pipeline_mode = #tpu.pipeline_mode<synchronous>, transform_indices = @transform_5, window_bounds = array<i64: 8, 32>}, {pipeline_mode = #tpu.pipeline_mode<synchronous>, transform_indices = @transform_6, window_bounds = array<i64: 1, 32>}, {transform_indices = @transform_7, window_bounds = array<i64: 2, 8, 32>}, {transform_indices = @transform_8, window_bounds = array<i64: 2, 1, 32>}]} {
    %c0 = arith.constant 0 : index
    %c0_0 = arith.constant 0 : index
    %c0_1 = arith.constant 0 : index
    %0 = vector.load %arg1[%c0, %c0_0, %c0_1] : memref<2x8x32xf32, #tpu.memory_space<vmem>>, vector<2x8x32xf32>
    %c0_2 = arith.constant 0 : index
    %c0_3 = arith.constant 0 : index
    %1 = vector.load %arg2[%c0_2, %c0_3] : memref<8x1xf32, #tpu.memory_space<vmem>>, vector<8x1xf32>
    %2 = vector.shape_cast %1 : vector<8x1xf32> to vector<1x8x1xf32>
    %3 = vector.broadcast %2 : vector<1x8x1xf32> to vector<2x8x32xf32>
    %4 = arith.mulf %0, %3 : vector<2x8x32xf32>
    %cst = arith.constant dense<0.000000e+00> : vector<2x32xf32>
    %5 = vector.multi_reduction <add>, %4, %cst [1] : vector<2x8x32xf32> to vector<2x32xf32>
    %c0_4 = arith.constant 0 : index
    %c0_5 = arith.constant 0 : index
    %6 = vector.load %arg3[%c0_4, %c0_5] : memref<1x1xf32, #tpu.memory_space<vmem>>, vector<1x1xf32>
    %7 = vector.broadcast %6 : vector<1x1xf32> to vector<2x32xf32>
    %8 = arith.addf %5, %7 : vector<2x32xf32>
    %c0_6 = arith.constant 0 : index
    %c0_7 = arith.constant 0 : index
    %9 = vector.load %arg4[%c0_6, %c0_7] : memref<32x8xf32, #tpu.memory_space<vmem>>, vector<32x8xf32>
    %cst_8 = arith.constant dense<0.000000e+00> : vector<2x8xf32>
    %10 = tpu.matmul %8, %9, %cst_8 {dimension_numbers = #tpu.dot_dimension_numbers<[1], [0], [0], [1], [0, 0, 1, 1], [], []>} : vector<2x32xf32>, vector<32x8xf32>, vector<2x8xf32> -> vector<2x8xf32>
    %c0_9 = arith.constant 0 : index
    %c0_10 = arith.constant 0 : index
    %11 = vector.load %arg5[%c0_9, %c0_10] : memref<1x8xf32, #tpu.memory_space<vmem>>, vector<1x8xf32>
    %12 = vector.broadcast %11 : vector<1x8xf32> to vector<2x8xf32>
    %13 = arith.addf %10, %12 : vector<2x8xf32>
    %cst_11 = arith.constant 0.000000e+00 : f32
    %14 = vector.broadcast %cst_11 : f32 to vector<2x8xf32>
    %15 = arith.maximumf %13, %14 : vector<2x8xf32>
    %c0_12 = arith.constant 0 : index
    %c0_13 = arith.constant 0 : index
    %16 = vector.load %arg6[%c0_12, %c0_13] : memref<8x32xf32, #tpu.memory_space<vmem>>, vector<8x32xf32>
    %cst_14 = arith.constant dense<0.000000e+00> : vector<2x32xf32>
    %17 = tpu.matmul %15, %16, %cst_14 {dimension_numbers = #tpu.dot_dimension_numbers<[1], [0], [0], [1], [0, 0, 1, 1], [], []>} : vector<2x8xf32>, vector<8x32xf32>, vector<2x32xf32> -> vector<2x32xf32>
    %c0_15 = arith.constant 0 : index
    %c0_16 = arith.constant 0 : index
    %18 = vector.load %arg7[%c0_15, %c0_16] : memref<1x32xf32, #tpu.memory_space<vmem>>, vector<1x32xf32>
    %19 = vector.broadcast %18 : vector<1x32xf32> to vector<2x32xf32>
    %20 = arith.addf %17, %19 : vector<2x32xf32>
    %cst_17 = arith.constant 0.000000e+00 : f32
    %21 = vector.broadcast %cst_17 : f32 to vector<2x32xf32>
    %22 = arith.subf %21, %20 : vector<2x32xf32>
    %23 = math.exp %22 : vector<2x32xf32>
    %cst_18 = arith.constant 1.000000e+00 : f32
    %24 = vector.broadcast %cst_18 : f32 to vector<2x32xf32>
    %25 = arith.addf %24, %23 : vector<2x32xf32>
    %cst_19 = arith.constant 1.000000e+00 : f32
    %26 = vector.broadcast %cst_19 : f32 to vector<2x32xf32>
    %27 = arith.divf %26, %25 : vector<2x32xf32>
    %28 = vector.shape_cast %27 : vector<2x32xf32> to vector<2x1x32xf32>
    %29 = vector.broadcast %28 : vector<2x1x32xf32> to vector<2x8x32xf32>
    %30 = arith.mulf %0, %29 : vector<2x8x32xf32>
    %c0_20 = arith.constant 0 : index
    %c0_21 = arith.constant 0 : index
    %c0_22 = arith.constant 0 : index
    %31 = vector.load %arg8[%c0_20, %c0_21, %c0_22] : memref<2x8x32xf32, #tpu.memory_space<vmem>>, vector<2x8x32xf32>
    tpu.vector_store %arg8[%c0_20, %c0_21, %c0_22], %30 {strides = array<i32>} : memref<2x8x32xf32, #tpu.memory_space<vmem>>, vector<2x8x32xf32>,
    %32 = vector.shape_cast %27 : vector<2x32xf32> to vector<2x1x32xf32>
    %c0_23 = arith.constant 0 : index
    %c0_24 = arith.constant 0 : index
    %c0_25 = arith.constant 0 : index
    %33 = vector.load %arg9[%c0_23, %c0_24, %c0_25] : memref<2x1x32xf32, #tpu.memory_space<vmem>>, vector<2x1x32xf32>
    tpu.vector_store %arg9[%c0_23, %c0_24, %c0_25], %32 {strides = array<i32>} : memref<2x1x32xf32, #tpu.memory_space<vmem>>, vector<2x1x32xf32>,
    return
  }
  func.func @transform_0(%arg0: i32) -> (i32, i32, i32) {
    %c0_i32 = arith.constant 0 : i32
    %c0_i32_0 = arith.constant 0 : i32
    %c0_i32_1 = arith.constant 0 : i32
    return %arg0, %c0_i32, %c0_i32_0 : i32, i32, i32
  }
  func.func @transform_1(%arg0: i32) -> (i32, i32) {
    %c0_i32 = arith.constant 0 : i32
    %c0_i32_0 = arith.constant 0 : i32
    %c0_i32_1 = arith.constant 0 : i32
    return %c0_i32, %c0_i32_0 : i32, i32
  }
  func.func @transform_2(%arg0: i32) -> (i32, i32) {
    %c0_i32 = arith.constant 0 : i32
    %c0_i32_0 = arith.constant 0 : i32
    %c0_i32_1 = arith.constant 0 : i32
    return %c0_i32, %c0_i32_0 : i32, i32
  }
  func.func @transform_3(%arg0: i32) -> (i32, i32) {
    %c0_i32 = arith.constant 0 : i32
    %c0_i32_0 = arith.constant 0 : i32
    %c0_i32_1 = arith.constant 0 : i32
    return %c0_i32, %c0_i32_0 : i32, i32
  }
  func.func @transform_4(%arg0: i32) -> (i32, i32) {
    %c0_i32 = arith.constant 0 : i32
    %c0_i32_0 = arith.constant 0 : i32
    %c0_i32_1 = arith.constant 0 : i32
    return %c0_i32, %c0_i32_0 : i32, i32
  }
  func.func @transform_5(%arg0: i32) -> (i32, i32) {
    %c0_i32 = arith.constant 0 : i32
    %c0_i32_0 = arith.constant 0 : i32
    %c0_i32_1 = arith.constant 0 : i32
    return %c0_i32, %c0_i32_0 : i32, i32
  }
  func.func @transform_6(%arg0: i32) -> (i32, i32) {
    %c0_i32 = arith.constant 0 : i32
    %c0_i32_0 = arith.constant 0 : i32
    %c0_i32_1 = arith.constant 0 : i32
    return %c0_i32, %c0_i32_0 : i32, i32
  }
  func.func @transform_7(%arg0: i32) -> (i32, i32, i32) {
    %c0_i32 = arith.constant 0 : i32
    %c0_i32_0 = arith.constant 0 : i32
    %c0_i32_1 = arith.constant 0 : i32
    return %arg0, %c0_i32, %c0_i32_0 : i32, i32, i32
  }
  func.func @transform_8(%arg0: i32) -> (i32, i32, i32) {
    %c0_i32 = arith.constant 0 : i32
    %c0_i32_0 = arith.constant 0 : i32
    %c0_i32_1 = arith.constant 0 : i32
    return %arg0, %c0_i32, %c0_i32_0 : i32, i32, i32
  }
}

</mosaic_0001>

<llo_original>
// kernel: tpu_custom_call.1
$region0: #{tpu_custom_call.1}
  #allocation0 [shape = 'u32[]', space=smem, size = 0x4, offset = 0x4, fixed_abs, tag = 'smem constant byte address 0x4 - core index']
  #allocation1 [shape = 'u32[72,128]{1,0:T(1,128)}', space=vmem, size = 0x9000, scoped, tag = 'internal scratch']
  #allocation2 [shape = 'f32[1,1]{1,0:T(1,128)S(1)}', space=vmem, size = 0x200, scoped, tag = 'scoped memory for tpu_custom_call.1']
  %s0 = inlined_call_operand.vmem [shape: f32[4,8,32], index: 0, kind: input, shape index: {}]
  %s1 = inlined_call_operand.vmem [shape: f32[8,1], index: 1, kind: input, shape index: {}]
  %s2 = inlined_call_operand.<no memory space> [shape: f32[1,1], index: 2, kind: input, shape index: {}]
  %s3 = inlined_call_operand.vmem [shape: f32[32,8], index: 3, kind: input, shape index: {}]
  %s4 = inlined_call_operand.vmem [shape: f32[1,8], index: 4, kind: input, shape index: {}]
  %s5 = inlined_call_operand.vmem [shape: f32[8,32], index: 5, kind: input, shape index: {}]
  %s6 = inlined_call_operand.vmem [shape: f32[1,32], index: 6, kind: input, shape index: {}]
  %s7 = inlined_call_operand.hbm [shape: f32[4,8,32], index: 7, kind: output, shape index: {0}]
  %s8 = inlined_call_operand.hbm [shape: f32[4,1,32], index: 8, kind: output, shape index: {1}]
  %9 = xla_tuple %s7, %s8
  %s10 = sld [smem:[#allocation0]]
  $region69: #{tpu_custom_call.1} parent=0
    _
  %s12 = ssub.s32 1, %s10
  %s13 = scalar_select 0, %s12, %s10
  %v14 = vstv %s2
  %15 = vst [vmem:[#allocation2] sm:$0x1] %v14
  $region1: #{tpu_custom_call.1} parent=0
    #allocation3 [shape = 'u8[16384]{0}', space=vmem, size = 0x4000, scoped, tag = 'output window, operand 0']
    #allocation4 [shape = 's32[2]{0}', space=sflag, size = 0x8, scoped, tag = 'scoped memory for tpu_custom_call.1']
    #allocation5 [shape = 'u8[2048]{0}', space=vmem, size = 0x800, scoped, tag = 'output window, operand 1']
    #allocation6 [shape = 's32[2]{0}', space=sflag, size = 0x8, scoped, tag = 'scoped memory for tpu_custom_call.1']
    %16 = vsyncpa [#allocation4], 0
    %s17 = scalar_lea.sflag [#allocation4], 1
    %18 = vsyncpa %s17, 0
    %19 = vsyncpa [#allocation6], 0
    %s20 = scalar_lea.sflag [#allocation6], 1
    %21 = vsyncpa %s20, 0
    loop: start=0, step=1, limit=4
    $region2: #{tpu_custom_call.1} parent=1 // loop_pre_header
      _
    $region3: #{tpu_custom_call.1} parent=1 // loop_header
      %s23 = sphi 0, %s27
      %p24 = scmp.ge.s32.totalorder %s23, 4
      %s33 = sphi 0, %s35
      %s36 = sphi 0, %s33
      %s37 = sphi 0, %s36
      %s53 = sphi 0, %s37
      %s57 = sphi 0, %s57
      %s59 = sphi 0, %s57
      %s60 = sphi 0, %s59
      %s74 = sphi 0, %s60
      %s78 = sphi 0, %s78
      %s80 = sphi 0, %s78
      %s81 = sphi 0, %s80
      %s95 = sphi 0, %s81
      %s99 = sphi 0, %s99
      %s101 = sphi 0, %s99
      %s102 = sphi 0, %s101
      %s116 = sphi 0, %s102
      %s120 = sphi 0, %s120
      %s122 = sphi 0, %s120
      %s123 = sphi 0, %s122
      %s137 = sphi 0, %s123
      %s141 = sphi 0, %s141
      %s143 = sphi 0, %s141
      %s144 = sphi 0, %s143
      %s158 = sphi 0, %s144
      %s162 = sphi 0, %s162
      %s164 = sphi 0, %s162
      %s165 = sphi 0, %s164
      %s179 = sphi 0, %s165
      %s185 = sphi 0, %s187
      %s188 = sphi 0, %s185
      %s189 = sphi 0, %s188
      %s205 = sphi 0, %s189
      %s211 = sphi 0, %s213
      %s214 = sphi 0, %s211
      %s215 = sphi 0, %s214
      %s231 = sphi 0, %s215
    $region4: #{tpu_custom_call.1} parent=1 // loop_header_branch
      %26 = sbr.rel (%p24) target = $region8
    $region5: #{tpu_custom_call.1} parent=1 // loop_body
      %s28 = ssub.s32 %s23, 1
      %s29 = ssub.s32 %s23, 2
      %s30 = sadd.s32 %s23, 1
      %s31 = ssub.s32 %s23, %s30
      %p32 = scmp.eq.s32.totalorder %s31, 0
      %s34 = sadd.s32 %s33, 1
      %s35 = scalar_select %p32, %s33, %s34
      %p38 = pneg %p32
      %p39 = scmp.eq.s32.totalorder %s23, 1
      %p40 = por %p38, %p39
      %p41 = scmp.ne.s32.totalorder %s33, %s36
      %p42 = scmp.eq.s32.totalorder %s23, 0
      %p43 = por %p41, %p42
      %p44 = scmp.ne.s32.totalorder %s33, %s36
      %p45 = scmp.eq.s32.totalorder %s28, 1
      %p46 = por %p44, %p45
      %p47 = scmp.ne.s32.totalorder %s36, %s37
      %p48 = scmp.eq.s32.totalorder %s28, 0
      %p49 = por %p47, %p48
      %p50 = scmp.ne.s32.totalorder %s36, %s37
      %p51 = scmp.eq.s32.totalorder %s29, 1
      %p52 = por %p50, %p51
      %p54 = scmp.ne.s32.totalorder %s37, %s53
      %p55 = scmp.eq.s32.totalorder %s29, 0
      %p56 = por %p54, %p55
      %s58 = sadd.s32 %s57, 1
      %p61 = scmp.eq.s32.totalorder %s23, 1
      %p62 = scmp.ne.s32.totalorder %s57, %s59
      %p63 = scmp.eq.s32.totalorder %s23, 0
      %p64 = por %p62, %p63
      %p65 = scmp.ne.s32.totalorder %s57, %s59
      %p66 = scmp.eq.s32.totalorder %s28, 1
      %p67 = por %p65, %p66
      %p68 = scmp.ne.s32.totalorder %s59, %s60
      %p69 = scmp.eq.s32.totalorder %s28, 0
      %p70 = por %p68, %p69
      %p71 = scmp.ne.s32.totalorder %s59, %s60
      %p72 = scmp.eq.s32.totalorder %s29, 1
      %p73 = por %p71, %p72
      %p75 = scmp.ne.s32.totalorder %s60, %s74
      %p76 = scmp.eq.s32.totalorder %s29, 0
      %p77 = por %p75, %p76
      %s79 = sadd.s32 %s78, 1
      %p82 = scmp.eq.s32.totalorder %s23, 1
      %p83 = scmp.ne.s32.totalorder %s78, %s80
      %p84 = scmp.eq.s32.totalorder %s23, 0
      %p85 = por %p83, %p84
      %p86 = scmp.ne.s32.totalorder %s78, %s80
      %p87 = scmp.eq.s32.totalorder %s28, 1
      %p88 = por %p86, %p87
      %p89 = scmp.ne.s32.totalorder %s80, %s81
      %p90 = scmp.eq.s32.totalorder %s28, 0
      %p91 = por %p89, %p90
      %p92 = scmp.ne.s32.totalorder %s80, %s81
      %p93 = scmp.eq.s32.totalorder %s29, 1
      %p94 = por %p92, %p93
      %p96 = scmp.ne.s32.totalorder %s81, %s95
      %p97 = scmp.eq.s32.totalorder %s29, 0
      %p98 = por %p96, %p97
      %s100 = sadd.s32 %s99, 1
      %p103 = scmp.eq.s32.totalorder %s23, 1
      %p104 = scmp.ne.s32.totalorder %s99, %s101
      %p105 = scmp.eq.s32.totalorder %s23, 0
      %p106 = por %p104, %p105
      %p107 = scmp.ne.s32.totalorder %s99, %s101
      %p108 = scmp.eq.s32.totalorder %s28, 1
      %p109 = por %p107, %p108
      %p110 = scmp.ne.s32.totalorder %s101, %s102
      %p111 = scmp.eq.s32.totalorder %s28, 0
      %p112 = por %p110, %p111
      %p113 = scmp.ne.s32.totalorder %s101, %s102
      %p114 = scmp.eq.s32.totalorder %s29, 1
      %p115 = por %p113, %p114
      %p117 = scmp.ne.s32.totalorder %s102, %s116
      %p118 = scmp.eq.s32.totalorder %s29, 0
      %p119 = por %p117, %p118
      %s121 = sadd.s32 %s120, 1
      %p124 = scmp.eq.s32.totalorder %s23, 1
      %p125 = scmp.ne.s32.totalorder %s120, %s122
      %p126 = scmp.eq.s32.totalorder %s23, 0
      %p127 = por %p125, %p126
      %p128 = scmp.ne.s32.totalorder %s120, %s122
      %p129 = scmp.eq.s32.totalorder %s28, 1
      %p130 = por %p128, %p129
      %p131 = scmp.ne.s32.totalorder %s122, %s123
      %p132 = scmp.eq.s32.totalorder %s28, 0
      %p133 = por %p131, %p132
      %p134 = scmp.ne.s32.totalorder %s122, %s123
      %p135 = scmp.eq.s32.totalorder %s29, 1
      %p136 = por %p134, %p135
      %p138 = scmp.ne.s32.totalorder %s123, %s137
      %p139 = scmp.eq.s32.totalorder %s29, 0
      %p140 = por %p138, %p139
      %s142 = sadd.s32 %s141, 1
      %p145 = scmp.eq.s32.totalorder %s23, 1
      %p146 = scmp.ne.s32.totalorder %s141, %s143
      %p147 = scmp.eq.s32.totalorder %s23, 0
      %p148 = por %p146, %p147
      %p149 = scmp.ne.s32.totalorder %s141, %s143
      %p150 = scmp.eq.s32.totalorder %s28, 1
      %p151 = por %p149, %p150
      %p152 = scmp.ne.s32.totalorder %s143, %s144
      %p153 = scmp.eq.s32.totalorder %s28, 0
      %p154 = por %p152, %p153
      %p155 = scmp.ne.s32.totalorder %s143, %s144
      %p156 = scmp.eq.s32.totalorder %s29, 1
      %p157 = por %p155, %p156
      %p159 = scmp.ne.s32.totalorder %s144, %s158
      %p160 = scmp.eq.s32.totalorder %s29, 0
      %p161 = por %p159, %p160
      %s163 = sadd.s32 %s162, 1
      %p166 = scmp.eq.s32.totalorder %s23, 1
      %p167 = scmp.ne.s32.totalorder %s162, %s164
      %p168 = scmp.eq.s32.totalorder %s23, 0
      %p169 = por %p167, %p168
      %p170 = scmp.ne.s32.totalorder %s162, %s164
      %p171 = scmp.eq.s32.totalorder %s28, 1
      %p172 = por %p170, %p171
      %p173 = scmp.ne.s32.totalorder %s164, %s165
      %p174 = scmp.eq.s32.totalorder %s28, 0
      %p175 = por %p173, %p174
      %p176 = scmp.ne.s32.totalorder %s164, %s165
      %p177 = scmp.eq.s32.totalorder %s29, 1
      %p178 = por %p176, %p177
      %p180 = scmp.ne.s32.totalorder %s165, %s179
      %p181 = scmp.eq.s32.totalorder %s29, 0
      %p182 = por %p180, %p181
      %s183 = ssub.s32 %s23, %s30
      %p184 = scmp.eq.s32.totalorder %s183, 0
      %s186 = sadd.s32 %s185, 1
      %s187 = scalar_select %p184, %s185, %s186
      %p190 = pneg %p184
      %p191 = scmp.eq.s32.totalorder %s23, 1
      %p192 = por %p190, %p191
      %p193 = scmp.ne.s32.totalorder %s185, %s188
      %p194 = scmp.eq.s32.totalorder %s23, 0
      %p195 = por %p193, %p194
      %p196 = scmp.ne.s32.totalorder %s185, %s188
      %p197 = scmp.eq.s32.totalorder %s28, 1
      %p198 = por %p196, %p197
      %p199 = scmp.ne.s32.totalorder %s188, %s189
      %p200 = scmp.eq.s32.totalorder %s28, 0
      %p201 = por %p199, %p200
      %p202 = scmp.ne.s32.totalorder %s188, %s189
      %p203 = scmp.eq.s32.totalorder %s29, 1
      %p204 = por %p202, %p203
      %p206 = scmp.ne.s32.totalorder %s189, %s205
      %p207 = scmp.eq.s32.totalorder %s29, 0
      %p208 = por %p206, %p207
      %s209 = ssub.s32 %s23, %s30
      %p210 = scmp.eq.s32.totalorder %s209, 0
      %s212 = sadd.s32 %s211, 1
      %s213 = scalar_select %p210, %s211, %s212
      %p216 = pneg %p210
      %p217 = scmp.eq.s32.totalorder %s23, 1
      %p218 = por %p216, %p217
      %p219 = scmp.ne.s32.totalorder %s211, %s214
      %p220 = scmp.eq.s32.totalorder %s23, 0
      %p221 = por %p219, %p220
      %p222 = scmp.ne.s32.totalorder %s211, %s214
      %p223 = scmp.eq.s32.totalorder %s28, 1
      %p224 = por %p222, %p223
      %p225 = scmp.ne.s32.totalorder %s214, %s215
      %p226 = scmp.eq.s32.totalorder %s28, 0
      %p227 = por %p225, %p226
      %p228 = scmp.ne.s32.totalorder %s214, %s215
      %p229 = scmp.eq.s32.totalorder %s29, 1
      %p230 = por %p228, %p229
      %p232 = scmp.ne.s32.totalorder %s215, %s231
      %p233 = scmp.eq.s32.totalorder %s29, 0
      %p234 = por %p232, %p233
      %p235 = scmp.le.s32.totalorder 1, %s23
      %p236 = scmp.lt.s32.totalorder %s23, 3
      %p237 = pnand %p235, %p236
      %p238 = pneg %p237
      // Predicated region
      $region9: #{tpu_custom_call.1} parent=5 // pred_check
        _
      $region10: #{tpu_custom_call.1} parent=5 // pred_check_branch
        %240 = sbr.rel (%p237) target = $region12
      $region11: #{tpu_custom_call.1} parent=5 // pred_region
        %s241 = ssub.s32 %s23, 1
        // Predicated region
        $region13: #{tpu_custom_call.1} parent=11 // pred_check
          %p242 = pneg %p70
        $region14: #{tpu_custom_call.1} parent=11 // pred_check_branch
          %244 = sbr.rel (%p242) target = $region16
        $region15: #{tpu_custom_call.1} parent=11 // pred_region
          _
        $region16: #{tpu_custom_call.1} parent=11 // pred_fallthru
          _
        // Predicated region
        $region17: #{tpu_custom_call.1} parent=11 // pred_check
          %p245 = pneg %p91
        $region18: #{tpu_custom_call.1} parent=11 // pred_check_branch
          %247 = sbr.rel (%p245) target = $region20
        $region19: #{tpu_custom_call.1} parent=11 // pred_region
          _
        $region20: #{tpu_custom_call.1} parent=11 // pred_fallthru
          _
        // Predicated region
        $region21: #{tpu_custom_call.1} parent=11 // pred_check
          %p248 = pneg %p112
        $region22: #{tpu_custom_call.1} parent=11 // pred_check_branch
          %250 = sbr.rel (%p248) target = $region24
        $region23: #{tpu_custom_call.1} parent=11 // pred_region
          _
        $region24: #{tpu_custom_call.1} parent=11 // pred_fallthru
          _
        // Predicated region
        $region25: #{tpu_custom_call.1} parent=11 // pred_check
          %p251 = pneg %p133
        $region26: #{tpu_custom_call.1} parent=11 // pred_check_branch
          %253 = sbr.rel (%p251) target = $region28
        $region27: #{tpu_custom_call.1} parent=11 // pred_region
          _
        $region28: #{tpu_custom_call.1} parent=11 // pred_fallthru
          _
        // Predicated region
        $region29: #{tpu_custom_call.1} parent=11 // pred_check
          %p254 = pneg %p154
        $region30: #{tpu_custom_call.1} parent=11 // pred_check_branch
          %256 = sbr.rel (%p254) target = $region32
        $region31: #{tpu_custom_call.1} parent=11 // pred_region
          _
        $region32: #{tpu_custom_call.1} parent=11 // pred_fallthru
          _
        // Predicated region
        $region33: #{tpu_custom_call.1} parent=11 // pred_check
          %p257 = pneg %p175
        $region34: #{tpu_custom_call.1} parent=11 // pred_check_branch
          %259 = sbr.rel (%p257) target = $region36
        $region35: #{tpu_custom_call.1} parent=11 // pred_region
          _
        $region36: #{tpu_custom_call.1} parent=11 // pred_fallthru
          _
      $region12: #{tpu_custom_call.1} parent=5 // pred_fallthru
        _
      %p260 = scmp.lt.s32.totalorder %s23, 2
      // Predicated region
      $region37: #{tpu_custom_call.1} parent=5 // pred_check
        %p261 = pneg %p260
      $region38: #{tpu_custom_call.1} parent=5 // pred_check_branch
        %263 = sbr.rel (%p261) target = $region40
      $region39: #{tpu_custom_call.1} parent=5 // pred_region
        // Predicated region
        $region41: #{tpu_custom_call.1} parent=39 // pred_check
          %p264 = pneg %p43
        $region42: #{tpu_custom_call.1} parent=39 // pred_check_branch
          %266 = sbr.rel (%p264) target = $region44
        $region43: #{tpu_custom_call.1} parent=39 // pred_region
          %s267 = smul.u32 2, %s23
          %p268 = scmp.lt.s32.totalorder %s267, 3
          %s269 = scalar_select %p268, %s267, 3
          %s270 = smul.addr %s269, 8
          %s271 = scalar_lea.vmem %s0, %s270
          %s272 = smul.u32 2, %s23
        $region44: #{tpu_custom_call.1} parent=39 // pred_fallthru
          _
      $region40: #{tpu_custom_call.1} parent=5 // pred_fallthru
        _
      %p273 = scmp.le.s32.totalorder 1, %s23
      %p274 = scmp.lt.s32.totalorder %s23, 3
      %p275 = pnand %p273, %p274
      %p276 = pneg %p275
      // Predicated region
      $region45: #{tpu_custom_call.1} parent=5 // pred_check
        _
      $region46: #{tpu_custom_call.1} parent=5 // pred_check_branch
        %278 = sbr.rel (%p275) target = $region48
      $region47: #{tpu_custom_call.1} parent=5 // pred_region
        %s279 = ssub.s32 %s23, 1
        %s280 = smul.u32 2, %s28
        %p281 = scmp.lt.s32.totalorder %s280, 3
        %s282 = scalar_select %p281, %s280, 3
        %s283 = smul.addr %s282, 8
        %s284 = scalar_lea.vmem %s0, %s283
        %p285 = pneg %p49
        %p286 = pneg %p46
        %p287 = pneg %p70
        %p288 = pneg %p67
        %p289 = pneg %p91
        %p290 = pneg %p88
        %p291 = pneg %p112
        %p292 = pneg %p109
        %p293 = pneg %p133
        %p294 = pneg %p130
        %p295 = pneg %p154
        %p296 = pneg %p151
        %p297 = pneg %p175
        %p298 = pneg %p172
        %p299 = pneg %p201
        %p300 = pneg %p198
        %s301 = sand.u32 %s188, 1
        %s302 = scalar_lea.sflag [#allocation4], %s301
        %s303 = sand.u32 %s188, 1
        %s304 = smul.addr %s303, 16
        %s305 = scalar_lea.vmem [#allocation3], %s304
        %p306 = pneg %p227
        %p307 = pneg %p224
        %s308 = sand.u32 %s214, 1
        %s309 = scalar_lea.sflag [#allocation6], %s308
        %s310 = sand.u32 %s214, 1
        %s311 = smul.addr %s310, 2
        %s312 = scalar_lea.vmem [#allocation5], %s311
        %s313 = smul.u32 2, %s28
        %p314 = scmp.lt.s32.totalorder %s313, 3
        %s315 = scalar_select %p314, %s313, 3
        %s316 = smul.addr %s315, 8
        %s317 = scalar_lea.vmem %s0, %s316
        %s318 = smul.u32 2, %s28
        %s319 = smul.u32 2, %s28
        %s320 = smul.u32 2, %s28
        %v321 = vld [vmem:[%s317] sm:$0xff]
        %v322 = vld [vmem:[%s317 + $0x8] sm:$0xff]
        %v323 = vld [vmem:[%s1] sm:$0xff]
        %325 = vset.pattern.permute.xlu0 0
        %326 = vperm.xlu0 %325, %v323
        %v327 = vpop.permute.xlu0 %326
        %v329 = vmul.f32 %v321, %v327
        %v330 = vmul.f32 %v322, %v327
        %vm331 = vcmask 261120
        %v332 = vsel %vm331, %v329, 0.0
        %v333 = vrot.slane %v332, 4
        %v334 = vadd.f32 %v332, %v333
        %v335 = vrot.slane %v334, 2
        %v336 = vadd.f32 %v334, %v335
        %v337 = vrot.slane %v336, 1
        %v338 = vadd.f32 %v336, %v337
        %v339 = vsel %vm331, %v330, 0.0
        %v340 = vrot.slane %v339, 4
        %v341 = vadd.f32 %v339, %v340
        %v342 = vrot.slane %v341, 2
        %v343 = vadd.f32 %v341, %v342
        %v344 = vrot.slane %v343, 1
        %v345 = vadd.f32 %v343, %v344
        %v346 = vld [vmem:[#allocation2] sm:$0x1]
        %v348 = vperm.slane %v346, 0
        %349 = vset.pattern.permute.xlu0 0
        %350 = vperm.xlu0 %349, %v348
        %v351 = vpop.permute.xlu0 %350
        %v353 = vadd.f32 %v338, %v351
        %v354 = vadd.f32 %v345, %v351
        %v355 = vld [vmem:[%s3] sm:$0xff]
        %v356 = vld [vmem:[%s3 + $0x8] sm:$0xff]
        %v357 = vld [vmem:[%s3 + $0x10] sm:$0xff]
        %v358 = vld [vmem:[%s3 + $0x18] sm:$0xff]
        %v359 = vld [vmem:[%s4] sm:$0x1]
        %v361 = vperm.slane %v359, 0
        %vm365 = vcmask 1041409
        %v366 = vsel %vm365, %v354, %v353
        %v367 = vsel %vm331, %v366, 0
        %369 = vmatpush.msra.mxu0 0.0
        %370 = vmatpush.msra.mxu0 0.0
        %371 = vmatpush.msra.mxu0 0.0
        %372 = vmatpush.msra.mxu0 0.0
        %373 = vmatpush.msra.mxu0 0.0
        %374 = vmatpush.msra.mxu0 0.0
        %375 = vmatpush.msra.mxu0 0.0
        %376 = vmatpush.msra.mxu0 0.0
        %377 = vmatpush.msra.mxu0 0.0
        %378 = vmatpush.msra.mxu0 0.0
        %379 = vmatpush.msra.mxu0 0.0
        %380 = vmatpush.msra.mxu0 0.0
        %381 = vmatpush.msra.mxu0 %v358
        %382 = vmatpush.msra.mxu0 %v357
        %383 = vmatpush.msra.mxu0 %v356
        %384 = vmatpush.msra.mxu0 %v355
        %385 = vmatmul.f32.gmra.mxu0 %v367
        %v386 = vpop.f32.mrf.mxu0
        %v387 = vadd.f32 %v361, %v386
        %388 = vdwg.mxu0
        %v389 = vmax.f32 %v387, 0.0
        %v390 = vld [vmem:[%s5] sm:$0xff]
        %v391 = vld [vmem:[%s6] sm:$0x1]
        %v393 = vperm.slane %v391, 0
        %vm395 = vcmask 64512
        %v397 = vsel %vm395, %v389, 0
        %399 = vmatpush.msra.mxu0 0.0
        %400 = vmatpush.msra.mxu0 0.0
        %401 = vmatpush.msra.mxu0 0.0
        %402 = vmatpush.msra.mxu0 0.0
        %403 = vmatpush.msra.mxu0 0.0
        %404 = vmatpush.msra.mxu0 0.0
        %405 = vmatpush.msra.mxu0 0.0
        %406 = vmatpush.msra.mxu0 0.0
        %407 = vmatpush.msra.mxu0 0.0
        %408 = vmatpush.msra.mxu0 0.0
        %409 = vmatpush.msra.mxu0 0.0
        %410 = vmatpush.msra.mxu0 0.0
        %411 = vmatpush.msra.mxu0 0.0
        %412 = vmatpush.msra.mxu0 0.0
        %413 = vmatpush.msra.mxu0 0.0
        %414 = vmatpush.msra.mxu0 %v390
        %415 = vmatmul.f32.gmra.mxu0 %v397
        %v416 = vpop.f32.mrf.mxu0
        %v417 = vadd.f32 %v393, %v416
        %418 = vdwg.mxu0
        %v419 = vsub.f32 0.0, %v417
        %v420 = vmul.f32 %v419, 1.442695
        %v421 = vpow.pop %v420
        %v422 = vadd.f32 %v421, 1.0
        %v423 = vrcp.pop %v422
        %v424 = vmul.f32 %v422, %v423
        %v425 = vsub.f32 1.0, %v424
        %v426 = vmul.f32 %v423, %v425
        %v427 = vadd.f32 %v423, %v426
        %vm428 = vweird.f32 %v422
        %vm429 = vweird.f32 %v423
        %vm430 = vmor %vm428, %vm429
        %v431 = vsel %vm430, %v423, %v427
        %v432 = vand.u32 2147483647, %v422
        %vm433 = vcmp.eq.f32.partialorder %v432, 8.507059e+37
        %v434 = vand.u32 %v422, 2147483648
        %v435 = vor.u32 1.1754944e-38, %v434
        %v436 = vsel %vm433, %v435, %v431
        %v437 = vmul.f32 1.0, %v436
        %v439 = vrot.slane %v437, 1
        %v441 = vperm.slane %v437, 0
        %v442 = vperm.slane %v439, 0
        %v445 = vmul.f32 %v321, %v441
        %v446 = vmul.f32 %v322, %v442
        %447 = vst.msk [vmem:[%s305] sm:$0xff] %vm331, %v445
        %448 = vst.msk [vmem:[%s305 + $0x8] sm:$0xff] %vm331, %v446
        %vm449 = vcmask 253952
        %450 = vst.msk [vmem:[%s312] sm:$0x1] %vm449, %v437
        %451 = vst.msk [vmem:[%s312 + $0x1] sm:$0x1] %vm449, %v439
        %s452 = sand.u32 %s188, 1
        %s453 = scalar_lea.sflag [#allocation4], %s452
        %s454 = sand.u32 %s188, 1
        %s455 = smul.addr %s454, 16
        %s456 = scalar_lea.vmem [#allocation3], %s455
        %s457 = sand.u32 %s214, 1
        %s458 = scalar_lea.sflag [#allocation6], %s457
        %s459 = sand.u32 %s214, 1
        %s460 = smul.addr %s459, 2
        %s461 = scalar_lea.vmem [#allocation5], %s460
        // Predicated region
        $region49: #{tpu_custom_call.1} parent=47 // pred_check
          %p462 = pneg %p198
        $region50: #{tpu_custom_call.1} parent=47 // pred_check_branch
          %464 = sbr.rel (%p462) target = $region52
        $region51: #{tpu_custom_call.1} parent=47 // pred_region
          %s465 = smul.u32 2, %s28
          %467 = vsyncadd %s453, 0
          %s468 = smul.addr %s465, 8
          %s469 = scalar_lea.hbm %s7, %s468
          %s470 = sshll.u32 %s456, 4
          %s471 = int_to_ptr.vmem [resolvable:$true] %s470
          %s472 = sshll.u32 %s469, 4
          %s473 = int_to_ptr.hbm [resolvable:$true] %s472
          %478 = dma.vmem_to_hbm [thread:$0]  %s471, 256, %s473, %s453, 128, 128, 8
        $region52: #{tpu_custom_call.1} parent=47 // pred_fallthru
          _
        // Predicated region
        $region53: #{tpu_custom_call.1} parent=47 // pred_check
          %p479 = pneg %p224
        $region54: #{tpu_custom_call.1} parent=47 // pred_check_branch
          %481 = sbr.rel (%p479) target = $region56
        $region55: #{tpu_custom_call.1} parent=47 // pred_region
          %s482 = smul.u32 2, %s28
          %484 = vsyncadd %s458, 0
          %s485 = scalar_lea.hbm %s8, %s482
          %s486 = sshll.u32 %s461, 4
          %s487 = int_to_ptr.vmem [resolvable:$true] %s486
          %s488 = sshll.u32 %s485, 4
          %s489 = int_to_ptr.hbm [resolvable:$true] %s488
          %494 = dma.vmem_to_hbm [thread:$0]  %s487, 32, %s489, %s458, 16, 16, 1
        $region56: #{tpu_custom_call.1} parent=47 // pred_fallthru
          _
      $region48: #{tpu_custom_call.1} parent=5 // pred_fallthru
        _
      %p495 = scmp.le.s32.totalorder 2, %s23
      // Predicated region
      $region57: #{tpu_custom_call.1} parent=5 // pred_check
        %p496 = pneg %p495
      $region58: #{tpu_custom_call.1} parent=5 // pred_check_branch
        %498 = sbr.rel (%p496) target = $region60
      $region59: #{tpu_custom_call.1} parent=5 // pred_region
        %s499 = ssub.s32 %s23, 2
        // Predicated region
        $region61: #{tpu_custom_call.1} parent=59 // pred_check
          %p500 = pneg %p204
        $region62: #{tpu_custom_call.1} parent=59 // pred_check_branch
          %502 = sbr.rel (%p500) target = $region64
        $region63: #{tpu_custom_call.1} parent=59 // pred_region
          %s503 = sand.u32 %s189, 1
          %s504 = scalar_lea.sflag [#allocation4], %s503
          %s505 = sand.u32 %s189, 1
          %s506 = smul.addr %s505, 16
          %s507 = scalar_lea.vmem [#allocation3], %s506
          %509 = dma.done %s504, 256
        $region64: #{tpu_custom_call.1} parent=59 // pred_fallthru
          _
        // Predicated region
        $region65: #{tpu_custom_call.1} parent=59 // pred_check
          %p510 = pneg %p230
        $region66: #{tpu_custom_call.1} parent=59 // pred_check_branch
          %512 = sbr.rel (%p510) target = $region68
        $region67: #{tpu_custom_call.1} parent=59 // pred_region
          %s513 = sand.u32 %s215, 1
          %s514 = scalar_lea.sflag [#allocation6], %s513
          %s515 = sand.u32 %s215, 1
          %s516 = smul.addr %s515, 2
          %s517 = scalar_lea.vmem [#allocation5], %s516
          %519 = dma.done %s514, 32
        $region68: #{tpu_custom_call.1} parent=59 // pred_fallthru
          _
      $region60: #{tpu_custom_call.1} parent=5 // pred_fallthru
        _
    $region6: #{tpu_custom_call.1} parent=1 // loop_footer
      %s27 = sadd.s32 1, %s23
    $region7: #{tpu_custom_call.1} parent=1 // loop_footer_branch
      %22 = sbr.rel target = $region3
    $region8: #{tpu_custom_call.1} parent=1 // loop_exit
      _
    %520 = vsyncpa [#allocation4], 1
    %s521 = scalar_lea.sflag [#allocation4], 1
    %522 = vsyncpa %s521, 1
    %523 = vsyncpa [#allocation6], 1
    %s524 = scalar_lea.sflag [#allocation6], 1
    %525 = vsyncpa %s524, 1

</llo_original>
